<compile_context>
chip_gen: v5e
topology: v5e:2x2
jax: 0.10.0
libtpu: 0.0.40
codegen_flags: <defaults>
</compile_context>

<pallas_src>
import functools

import jax
import jax.numpy as jnp
from jax import lax
from jax.experimental import pallas as pl
from jax.experimental.pallas import tpu as pltpu

_LANE = 128


def _round_up(x, m):
    return (x + m - 1) // m * m


def _num_tensorcores():
    """Best-effort TensorCore count per chip (1 on v5e/v6e, 2 on v7x)."""
    try:
        info = pltpu.get_tpu_info()
        for attr in ("num_tensorcores", "tensorcore_count", "num_cores",
                     "cores_per_chip", "core_count"):
            v = getattr(info, attr, None)
            if isinstance(v, int) and v > 0:
                return v
    except Exception:
        pass
    return 1  # conservative default: single-TC behaviour is never wrong


def _gram_kernel(f_ref, g_ref, *, tile, full, spc, needs_mask, contract_axis):
    """Accumulates one partial Gram over the reduction grid axis (axis 1)."""
    k = pl.program_id(1)

    @pl.when(k == 0)
    def _():
        g_ref[...] = jnp.zeros_like(g_ref)

    # Contract the streamed axis of BOTH operands so Mosaic takes the
    # transposed-operand MXU path (no materialized transpose temp).
    dims = (((contract_axis,), (contract_axis,)), ((), ()))

    def accumulate(f):
        g_ref[...] += lax.dot_general(
            f, f, dimension_numbers=dims, preferred_element_type=jnp.float32)

    if not needs_mask:
        accumulate(f_ref[...])
    else:
        c = pl.program_id(0)
        start = (c * spc + k) * tile      # UNCLAMPED element offset along reduce axis

        @pl.when(start + tile <= full)
        def _():                          # interior block: no masking work
            accumulate(f_ref[...])

        @pl.when(start + tile > full)
        def _():                          # ragged tail (or fully-OOB duplicate block)
            f = f_ref[...]
            idx = lax.broadcasted_iota(jnp.int32, f.shape, dimension=contract_axis)
            accumulate(jnp.where(idx + start < full, f, jnp.zeros_like(f)))


def _gram_pallas(f, *, contract_axis=1, tile=None, target_block_bytes=8 << 20):
    """Float32 Gram of a 2-D array F, streaming the contracted axis from HBM.

    contract_axis=1: G = F @ F.T   (keep = F.shape[0])
    contract_axis=0: G = F.T @ F   (keep = F.shape[1], no transposed copy of F)
    """
    assert f.ndim == 2 and contract_axis in (0, 1)
    keep = f.shape[1 - contract_axis]
    reduce_dim = f.shape[contract_axis]
    itemsize = f.dtype.itemsize
    sub = max(8, 32 // itemsize)          # sublane packing: f32 -> 8, bf16 -> 16, i8 -> 32

    if contract_axis == 1:
        align = _LANE                     # block (keep, tile): tile is lane axis
        padded_keep = _round_up(keep, sub)
    else:
        align = sub                       # block (tile, keep): tile is sublane axis
        padded_keep = _round_up(keep, _LANE)

    if tile is None:
        # Largest aligned tile whose PADDED block stays within the byte budget.
        tile = (target_block_bytes // max(padded_keep * itemsize, 1)) // align * align
        tile = max(tile, align)
    if tile >= reduce_dim:
        tile = reduce_dim                 # single full block (no alignment needed)
    else:
        tile = max(align, (tile // align) * align)

    nchunks = pl.cdiv(reduce_dim, tile)

    # Partial-Gram split only pays when the leading "parallel" axis can be
    # sharded across >1 TensorCore (v7x); on single-TC chips it is pure overhead.
    # TODO(synk): confirm via xprof that Mosaic core-shards this axis on v7x; if
    # it runs serially, switch to pltpu.CORE_PARALLEL / pl.core_map.
    num_partials = 2 if (_num_tensorcores() >= 2 and nchunks >= 2) else 1
    spc = pl.cdiv(nchunks, num_partials)                # reduction steps per partial
    needs_mask = (reduce_dim % tile != 0) or (num_partials * spc != nchunks)

    if num_partials * spc > nchunks:
        # Odd chunk count: the last step of the last partial would index past the
        # array; clamp the DMA to the last valid block (fully zero-masked in-kernel).
        def reduce_index(c, k):
            return jnp.minimum(c * spc + k, nchunks - 1)
    else:
        def reduce_index(c, k):
            return c * spc + k

    if contract_axis == 1:
        block_shape = (keep, tile)
        in_index = lambda c, k: (0, reduce_index(c, k))
        block_bytes = padded_keep * tile * itemsize
    else:
        block_shape = (tile, keep)
        in_index = lambda c, k: (reduce_index(c, k), 0)
        block_bytes = tile * padded_keep * itemsize

    out_bytes = _round_up(keep, 8) * _round_up(keep, _LANE) * 4
    # Double-buffered input + resident/writeback output + generous headroom.
    vmem_limit = int(max(2 * block_bytes + 4 * out_bytes + (8 << 20), 24 << 20))

    kernel = functools.partial(
        _gram_kernel, tile=tile, full=reduce_dim, spc=spc,
        needs_mask=needs_mask, contract_axis=contract_axis)

    partials = pl.pallas_call(
        kernel,
        out_shape=jax.ShapeDtypeStruct((num_partials, keep, keep), jnp.float32),
        grid_spec=pltpu.PrefetchScalarGridSpec(
            num_scalar_prefetch=0,
            grid=(num_partials, spc),
            in_specs=[pl.BlockSpec(block_shape, in_index)],
            out_specs=pl.BlockSpec((None, keep, keep), lambda c, k: (c, 0, 0)),
        ),
        compiler_params=pltpu.CompilerParams(
            dimension_semantics=("parallel", "arbitrary"),
            vmem_limit_bytes=vmem_limit,
        ),
        cost_estimate=pl.CostEstimate(
            flops=2 * keep * keep * reduce_dim,
            transcendentals=0,
            bytes_accessed=f.size * itemsize + num_partials * keep * keep * 4,
        ),
    )(f)
    return partials.sum(axis=0)


@functools.partial(jax.jit, static_argnames=("alpha",))
def bss_loss(x, alpha=0.001):
    """BSS forward: alpha * (smallest singular value of flattened features)^2."""
    b = x.shape[0]
    f = x.reshape(b, -1)                          # keep native dtype (bf16 stays bf16)
    if not jnp.issubdtype(f.dtype, jnp.floating):
        f = f.astype(jnp.float32)
    d = f.shape[1]

    # sigma_min(F)^2 == smallest eigenvalue of the Gram over the smaller side.
    if d >= b:
        g = _gram_pallas(f, contract_axis=1)      # (b, b), stream over D
    else:
        # Rare branch (batch > feature count); contracts dim 0 directly so no
        # transposed copy of F is ever materialized in HBM.
        g = _gram_pallas(f, contract_axis=0)      # (d, d), stream over B

    # NOTE: Gram+eigvalsh squares the condition number; for very ill-conditioned
    # bf16 features the smallest eigenvalue can be rounding-dominated.
    # TODO(synk): the tiny symmetric eigensolve has no Pallas equivalent and
    # stays in XLA; if this loss is differentiated during training, add a
    # custom_vjp (dL/dF = 2*alpha * v_min v_min^T F) since pallas_call has no
    # automatic VJP and the eigvalsh gradient is unstable near-degenerate.
    eigvals = jnp.linalg.eigvalsh(g)              # ascending
    s_min_sq = jnp.maximum(eigvals[0], 0.0)       # guard f32 rounding below zero
    return alpha * s_min_sq


if __name__ == "__main__":
    key = jax.random.PRNGKey(0)
    k1, k2, k3 = jax.random.split(key, 3)

    # Small NCHW conv-feature map, consistent with the PyTorch module.
    x = jax.random.normal(k1, (2, 4, 16, 16), dtype=jnp.float32)
    loss = bss_loss(x, alpha=0.001)
    jax.block_until_ready(loss)

    # Reference: direct SVD (same semantics as torch.svd in the original module).
    f = x.reshape(x.shape[0], -1)
    s = jnp.linalg.svd(f, compute_uv=False)
    ref = 0.001 * s[-1] ** 2
    assert jnp.allclose(loss, ref, rtol=1e-2, atol=1e-6), (float(loss), float(ref))

    # Multi-chunk reduction path (ragged-tail masking, optional partial split)
    # with a native-bf16 input and a deliberately small tile.
    x2 = jax.random.normal(k2, (8, 3, 20, 20), dtype=jnp.bfloat16)
    f2 = x2.reshape(8, -1)                                    # (8, 1200) -> 5 chunks of 256
    g2 = _gram_pallas(f2, contract_axis=1, tile=256)
    jax.block_until_ready(g2)
    f2_32 = f2.astype(jnp.float32)
    g2_ref = jnp.matmul(f2_32, f2_32.T, precision=lax.Precision.HIGHEST)
    assert jnp.allclose(g2, g2_ref, rtol=5e-3, atol=1e-1), "gram axis1 mismatch"

    # d < b branch: contract along rows (no transposed copy of F in HBM),
    # ragged tail along the sublane axis.
    f3 = jax.random.normal(k3, (70, 8), dtype=jnp.float32)
    g3 = _gram_pallas(f3, contract_axis=0, tile=16)           # 5 chunks of 16 rows
    jax.block_until_ready(g3)
    g3_ref = jnp.matmul(f3.T, f3, precision=lax.Precision.HIGHEST)
    assert jnp.allclose(g3, g3_ref, rtol=1e-2, atol=1e-2), "gram axis0 mismatch"

    loss3 = bss_loss(f3)                                      # end-to-end d < b branch
    jax.block_until_ready(loss3)
    s3 = jnp.linalg.svd(f3, compute_uv=False)
    assert jnp.allclose(loss3, 0.001 * s3[-1] ** 2, rtol=1e-2, atol=1e-5)

    print("KERNEL_OK")
</pallas_src>

<mosaic_0001>
module attributes {stable_mosaic.version = 11 : i64} {
  func.func @_gram_kernel(%arg0: i32, %arg1: i32, %arg2: memref<2x1024xf32, #tpu.memory_space<vmem>>, %arg3: memref<1x2x2xf32, #tpu.memory_space<vmem>>) attributes {dimension_semantics = [#tpu.dimension_semantics<parallel>, #tpu.dimension_semantics<arbitrary>], iteration_bounds = array<i64: 1, 1>, scalar_prefetch = 0 : i64, scratch_operands = 0 : i64, tpu.core_type = #tpu.core_type<tc>, window_params = [{transform_indices = @transform_0, window_bounds = array<i64: 2, 1024>}, {transform_indices = @transform_1, window_bounds = array<i64: 1, 2, 2>}]} {
    %c0_i32 = arith.constant 0 : i32
    %0 = arith.cmpi eq, %arg1, %c0_i32 : i32
    %1 = arith.extui %0 : i1 to i32
    %c0_i32_0 = arith.constant 0 : i32
    %2 = arith.cmpi ne, %1, %c0_i32_0 : i32
    scf.if %2 {
      %cst_8 = arith.constant 0.000000e+00 : f32
      %11 = vector.broadcast %cst_8 : f32 to vector<2x2xf32>
      %c0_9 = arith.constant 0 : index
      %c0_10 = arith.constant 0 : index
      %c0_11 = arith.constant 0 : index
      %12 = vector.load %arg3[%c0_9, %c0_10, %c0_11] : memref<1x2x2xf32, #tpu.memory_space<vmem>>, vector<1x2x2xf32>
      %13 = vector.shape_cast %12 : vector<1x2x2xf32> to vector<2x2xf32>
      %14 = vector.shape_cast %11 : vector<2x2xf32> to vector<1x2x2xf32>
      tpu.vector_store %arg3[%c0_9, %c0_10, %c0_11], %14 {strides = array<i32>} : memref<1x2x2xf32, #tpu.memory_space<vmem>>, vector<1x2x2xf32>,
    } else {
    }
    %c0 = arith.constant 0 : index
    %c0_1 = arith.constant 0 : index
    %3 = vector.load %arg2[%c0, %c0_1] : memref<2x1024xf32, #tpu.memory_space<vmem>>, vector<2x1024xf32>
    %c0_2 = arith.constant 0 : index
    %c0_3 = arith.constant 0 : index
    %c0_4 = arith.constant 0 : index
    %4 = vector.load %arg3[%c0_2, %c0_3, %c0_4] : memref<1x2x2xf32, #tpu.memory_space<vmem>>, vector<1x2x2xf32>
    %5 = vector.shape_cast %4 : vector<1x2x2xf32> to vector<2x2xf32>
    %cst = arith.constant dense<0.000000e+00> : vector<2x2xf32>
    %6 = tpu.matmul %3, %3, %cst {dimension_numbers = #tpu.dot_dimension_numbers<[1], [1], [0], [0], [0, 0, 1, 0], [], []>} : vector<2x1024xf32>, vector<2x1024xf32>, vector<2x2xf32> -> vector<2x2xf32>
    %7 = arith.addf %5, %6 : vector<2x2xf32>
    %c0_5 = arith.constant 0 : index
    %c0_6 = arith.constant 0 : index
    %c0_7 = arith.constant 0 : index
    %8 = vector.load %arg3[%c0_5, %c0_6, %c0_7] : memref<1x2x2xf32, #tpu.memory_space<vmem>>, vector<1x2x2xf32>
    %9 = vector.shape_cast %8 : vector<1x2x2xf32> to vector<2x2xf32>
    %10 = vector.shape_cast %7 : vector<2x2xf32> to vector<1x2x2xf32>
    tpu.vector_store %arg3[%c0_5, %c0_6, %c0_7], %10 {strides = array<i32>} : memref<1x2x2xf32, #tpu.memory_space<vmem>>, vector<1x2x2xf32>,
    return
  }
  func.func @transform_0(%arg0: i32, %arg1: i32) -> (i32, i32) {
    %c1_i32 = arith.constant 1 : i32
    %0 = arith.muli %arg0, %c1_i32 : i32
    %1 = arith.addi %0, %arg1 : i32
    %c0_i32 = arith.constant 0 : i32
    %c0_i32_0 = arith.constant 0 : i32
    return %c0_i32, %1 : i32, i32
  }
  func.func @transform_1(%arg0: i32, %arg1: i32) -> (i32, i32, i32) {
    %c0_i32 = arith.constant 0 : i32
    %c0_i32_0 = arith.constant 0 : i32
    %c0_i32_1 = arith.constant 0 : i32
    return %arg0, %c0_i32, %c0_i32_0 : i32, i32, i32
  }
}

</mosaic_0001>

<llo_original>
// kernel: bss_loss.1
$region0: #{bss_loss.1}
  #allocation0 [shape = 'u32[]', space=smem, size = 0x4, offset = 0x4, fixed_abs, tag = 'smem constant byte address 0x4 - core index']
  #allocation1 [shape = 'u32[72,128]{1,0:T(1,128)}', space=vmem, size = 0x9000, scoped, tag = 'internal scratch']
  %s0 = inlined_call_operand.vmem [shape: f32[2,1024], index: 0, kind: input, shape index: {}]
  %s1 = inlined_call_operand.vmem [shape: f32[1,2,2], index: 1, kind: output, shape index: {}]
  %s2 = sld [smem:[#allocation0]]
  $region18: #{bss_loss.1} parent=0
    _
  %s4 = ssub.s32 1, %s2
  %s5 = scalar_select 0, %s4, %s2
  // Predicated region
  $region2: #{bss_loss.1} parent=0 // pred_check
    _
  $region3: #{bss_loss.1} parent=0 // pred_check_branch
    %7 = sbr.rel (0) target = $region5
  $region4: #{bss_loss.1} parent=0 // pred_region
    %s8 = sadd.s32 0, 0
    %s9 = smul.u32 8, %s8
    %p10 = scmp.lt.s32.totalorder %s9, 7
    %s11 = scalar_select %p10, %s9, 7
    %s12 = smul.addr %s11, 2
    %s13 = scalar_lea.vmem %s0, %s12
    %s14 = sadd.s32 0, 0
    %s15 = smul.u32 8, %s14
  $region5: #{bss_loss.1} parent=0 // pred_fallthru
    _
  %s16 = sadd.s32 0, 0
  %s17 = smul.u32 8, %s16
  %p18 = scmp.lt.s32.totalorder %s17, 7
  %s19 = scalar_select %p18, %s17, 7
  %s20 = smul.addr %s19, 2
  %s21 = scalar_lea.vmem %s0, %s20
  %s22 = sadd.s32 0, 0
  %s23 = smul.u32 8, %s22
  %p24 = scmp.lt.s32.totalorder %s23, 7
  %s25 = scalar_select %p24, %s23, 7
  %s26 = smul.addr %s25, 2
  %s27 = scalar_lea.vmem %s0, %s26
  %s28 = sadd.s32 0, 0
  %s29 = smul.u32 8, %s28
  %p30 = scmp.eq.s32.totalorder 0, 0
  // Predicated region
  $region6: #{bss_loss.1} parent=0 // pred_check
    %p31 = pneg %p30
  $region7: #{bss_loss.1} parent=0 // pred_check_branch
    %33 = sbr.rel (%p31) target = $region9
  $region8: #{bss_loss.1} parent=0 // pred_region
    %vm34 = vcmask 9216
    %35 = vst.msk [vmem:[%s1] sm:$0x3] %vm34, 0.0
  $region9: #{bss_loss.1} parent=0 // pred_fallthru
    _
  %v36 = vld [vmem:[%s27] sm:$0xff]
  %v37 = vld [vmem:[%s27 + $0x8] sm:$0xff]
  %v38 = vld [vmem:[%s1] sm:$0x3]
  %41 = vst [vmem:[#allocation1] ss:$4 sm:$0xff] %v36
  %s42 = scalar_lea.vmem [#allocation1], 32
  %43 = vst [vmem:[%s42] ss:$4 sm:$0xff] %v37
  %v44 = vld.sshfl [vmem:[#allocation1] sm:$0xff pattern:$0x73625140]
  %v45 = vld.sshfl [vmem:[#allocation1 + $0x8] sm:$0xff pattern:$0x73625140]
  %v46 = vld.sshfl [vmem:[#allocation1 + $0x10] sm:$0xff pattern:$0x73625140]
  %v47 = vld.sshfl [vmem:[#allocation1 + $0x18] sm:$0xff pattern:$0x73625140]
  %v48 = vld.sshfl [vmem:[#allocation1 + $0x20] sm:$0xff pattern:$0x73625140]
  %v49 = vld.sshfl [vmem:[#allocation1 + $0x28] sm:$0xff pattern:$0x73625140]
  %v50 = vld.sshfl [vmem:[#allocation1 + $0x30] sm:$0xff pattern:$0x73625140]
  %v51 = vld.sshfl [vmem:[#allocation1 + $0x38] sm:$0xff pattern:$0x73625140]
  %60 = vst [vmem:[#allocation1] ss:$4 sm:$0xff] %v36
  %s61 = scalar_lea.vmem [#allocation1], 32
  %62 = vst [vmem:[%s61] ss:$4 sm:$0xff] %v37
  %v63 = vld.sshfl [vmem:[#allocation1] sm:$0xff pattern:$0x73625140]
  %v64 = vld.sshfl [vmem:[#allocation1 + $0x8] sm:$0xff pattern:$0x73625140]
  %v65 = vld.sshfl [vmem:[#allocation1 + $0x10] sm:$0xff pattern:$0x73625140]
  %v66 = vld.sshfl [vmem:[#allocation1 + $0x18] sm:$0xff pattern:$0x73625140]
  %v67 = vld.sshfl [vmem:[#allocation1 + $0x20] sm:$0xff pattern:$0x73625140]
  %v68 = vld.sshfl [vmem:[#allocation1 + $0x28] sm:$0xff pattern:$0x73625140]
  %v69 = vld.sshfl [vmem:[#allocation1 + $0x30] sm:$0xff pattern:$0x73625140]
  %v70 = vld.sshfl [vmem:[#allocation1 + $0x38] sm:$0xff pattern:$0x73625140]
  %79 = vmatpush.xpose.msra.mxu0 0.0
  %80 = vmatpush.xpose.msra.mxu0 0.0
  %81 = vmatpush.xpose.msra.mxu0 0.0
  %82 = vmatpush.xpose.msra.mxu0 0.0
  %83 = vmatpush.xpose.msra.mxu0 0.0
  %84 = vmatpush.xpose.msra.mxu0 0.0
  %85 = vmatpush.xpose.msra.mxu0 0.0
  %86 = vmatpush.xpose.msra.mxu0 0.0
  %87 = vmatpush.xpose.msra.mxu0 0.0
  %88 = vmatpush.xpose.msra.mxu0 0.0
  %89 = vmatpush.xpose.msra.mxu0 0.0
  %90 = vmatpush.xpose.msra.mxu0 0.0
  %91 = vmatpush.xpose.msra.mxu0 0.0
  %92 = vmatpush.xpose.msra.mxu0 0.0
  %93 = vmatpush.xpose.msra.mxu0 0.0
  %94 = vmatpush.xpose.msra.mxu0 %v63
  %95 = vmatmul.f32.gmra.mxu0 %v44
  %v96 = vpop.f32.mrf.mxu0
  %v97 = vadd.f32 0.0, %v96
  %98 = vdwg.mxu0
  %99 = vmatpush.xpose.msra.mxu0 0.0
  %100 = vmatpush.xpose.msra.mxu0 0.0
  %101 = vmatpush.xpose.msra.mxu0 0.0
  %102 = vmatpush.xpose.msra.mxu0 0.0
  %103 = vmatpush.xpose.msra.mxu0 0.0
  %104 = vmatpush.xpose.msra.mxu0 0.0
  %105 = vmatpush.xpose.msra.mxu0 0.0
  %106 = vmatpush.xpose.msra.mxu0 0.0
  %107 = vmatpush.xpose.msra.mxu0 0.0
  %108 = vmatpush.xpose.msra.mxu0 0.0
  %109 = vmatpush.xpose.msra.mxu0 0.0
  %110 = vmatpush.xpose.msra.mxu0 0.0
  %111 = vmatpush.xpose.msra.mxu0 0.0
  %112 = vmatpush.xpose.msra.mxu0 0.0
  %113 = vmatpush.xpose.msra.mxu0 0.0
  %114 = vmatpush.xpose.msra.mxu0 %v64
  %115 = vmatmul.f32.gmra.mxu0 %v45
  %v116 = vpop.f32.mrf.mxu0
  %v117 = vadd.f32 %v97, %v116
  %118 = vdwg.mxu0
  %119 = vmatpush.xpose.msra.mxu0 0.0
  %120 = vmatpush.xpose.msra.mxu0 0.0
  %121 = vmatpush.xpose.msra.mxu0 0.0
  %122 = vmatpush.xpose.msra.mxu0 0.0
  %123 = vmatpush.xpose.msra.mxu0 0.0
  %124 = vmatpush.xpose.msra.mxu0 0.0
  %125 = vmatpush.xpose.msra.mxu0 0.0
  %126 = vmatpush.xpose.msra.mxu0 0.0
  %127 = vmatpush.xpose.msra.mxu0 0.0
  %128 = vmatpush.xpose.msra.mxu0 0.0
  %129 = vmatpush.xpose.msra.mxu0 0.0
  %130 = vmatpush.xpose.msra.mxu0 0.0
  %131 = vmatpush.xpose.msra.mxu0 0.0
  %132 = vmatpush.xpose.msra.mxu0 0.0
  %133 = vmatpush.xpose.msra.mxu0 0.0
  %134 = vmatpush.xpose.msra.mxu0 %v65
  %135 = vmatmul.f32.gmra.mxu0 %v46
  %v136 = vpop.f32.mrf.mxu0
  %v137 = vadd.f32 %v117, %v136
  %138 = vdwg.mxu0
  %139 = vmatpush.xpose.msra.mxu0 0.0
  %140 = vmatpush.xpose.msra.mxu0 0.0
  %141 = vmatpush.xpose.msra.mxu0 0.0
  %142 = vmatpush.xpose.msra.mxu0 0.0
  %143 = vmatpush.xpose.msra.mxu0 0.0
  %144 = vmatpush.xpose.msra.mxu0 0.0
  %145 = vmatpush.xpose.msra.mxu0 0.0
  %146 = vmatpush.xpose.msra.mxu0 0.0
  %147 = vmatpush.xpose.msra.mxu0 0.0
  %148 = vmatpush.xpose.msra.mxu0 0.0
  %149 = vmatpush.xpose.msra.mxu0 0.0
  %150 = vmatpush.xpose.msra.mxu0 0.0
  %151 = vmatpush.xpose.msra.mxu0 0.0
  %152 = vmatpush.xpose.msra.mxu0 0.0
  %153 = vmatpush.xpose.msra.mxu0 0.0
  %154 = vmatpush.xpose.msra.mxu0 %v66
  %155 = vmatmul.f32.gmra.mxu0 %v47
  %v156 = vpop.f32.mrf.mxu0
  %v157 = vadd.f32 %v137, %v156
  %158 = vdwg.mxu0
  %159 = vmatpush.xpose.msra.mxu0 0.0
  %160 = vmatpush.xpose.msra.mxu0 0.0
  %161 = vmatpush.xpose.msra.mxu0 0.0
  %162 = vmatpush.xpose.msra.mxu0 0.0
  %163 = vmatpush.xpose.msra.mxu0 0.0
  %164 = vmatpush.xpose.msra.mxu0 0.0
  %165 = vmatpush.xpose.msra.mxu0 0.0
  %166 = vmatpush.xpose.msra.mxu0 0.0
  %167 = vmatpush.xpose.msra.mxu0 0.0
  %168 = vmatpush.xpose.msra.mxu0 0.0
  %169 = vmatpush.xpose.msra.mxu0 0.0
  %170 = vmatpush.xpose.msra.mxu0 0.0
  %171 = vmatpush.xpose.msra.mxu0 0.0
  %172 = vmatpush.xpose.msra.mxu0 0.0
  %173 = vmatpush.xpose.msra.mxu0 0.0
  %174 = vmatpush.xpose.msra.mxu0 %v67
  %175 = vmatmul.f32.gmra.mxu0 %v48
  %v176 = vpop.f32.mrf.mxu0
  %v177 = vadd.f32 %v157, %v176
  %178 = vdwg.mxu0
  %179 = vmatpush.xpose.msra.mxu0 0.0
  %180 = vmatpush.xpose.msra.mxu0 0.0
  %181 = vmatpush.xpose.msra.mxu0 0.0
  %182 = vmatpush.xpose.msra.mxu0 0.0
  %183 = vmatpush.xpose.msra.mxu0 0.0
  %184 = vmatpush.xpose.msra.mxu0 0.0
  %185 = vmatpush.xpose.msra.mxu0 0.0
  %186 = vmatpush.xpose.msra.mxu0 0.0
  %187 = vmatpush.xpose.msra.mxu0 0.0
  %188 = vmatpush.xpose.msra.mxu0 0.0
  %189 = vmatpush.xpose.msra.mxu0 0.0
  %190 = vmatpush.xpose.msra.mxu0 0.0
  %191 = vmatpush.xpose.msra.mxu0 0.0
  %192 = vmatpush.xpose.msra.mxu0 0.0
  %193 = vmatpush.xpose.msra.mxu0 0.0
  %194 = vmatpush.xpose.msra.mxu0 %v68
  %195 = vmatmul.f32.gmra.mxu0 %v49
  %v196 = vpop.f32.mrf.mxu0
  %v197 = vadd.f32 %v177, %v196
  %198 = vdwg.mxu0
  %199 = vmatpush.xpose.msra.mxu0 0.0
  %200 = vmatpush.xpose.msra.mxu0 0.0
  %201 = vmatpush.xpose.msra.mxu0 0.0
  %202 = vmatpush.xpose.msra.mxu0 0.0
  %203 = vmatpush.xpose.msra.mxu0 0.0
  %204 = vmatpush.xpose.msra.mxu0 0.0
  %205 = vmatpush.xpose.msra.mxu0 0.0
  %206 = vmatpush.xpose.msra.mxu0 0.0
  %207 = vmatpush.xpose.msra.mxu0 0.0
  %208 = vmatpush.xpose.msra.mxu0 0.0
  %209 = vmatpush.xpose.msra.mxu0 0.0
  %210 = vmatpush.xpose.msra.mxu0 0.0
  %211 = vmatpush.xpose.msra.mxu0 0.0
  %212 = vmatpush.xpose.msra.mxu0 0.0
  %213 = vmatpush.xpose.msra.mxu0 0.0
  %214 = vmatpush.xpose.msra.mxu0 %v69
  %215 = vmatmul.f32.gmra.mxu0 %v50
  %v216 = vpop.f32.mrf.mxu0
  %v217 = vadd.f32 %v197, %v216
  %218 = vdwg.mxu0
  %219 = vmatpush.xpose.msra.mxu0 0.0
  %220 = vmatpush.xpose.msra.mxu0 0.0
  %221 = vmatpush.xpose.msra.mxu0 0.0
  %222 = vmatpush.xpose.msra.mxu0 0.0
  %223 = vmatpush.xpose.msra.mxu0 0.0
  %224 = vmatpush.xpose.msra.mxu0 0.0
  %225 = vmatpush.xpose.msra.mxu0 0.0
  %226 = vmatpush.xpose.msra.mxu0 0.0
  %227 = vmatpush.xpose.msra.mxu0 0.0
  %228 = vmatpush.xpose.msra.mxu0 0.0
  %229 = vmatpush.xpose.msra.mxu0 0.0
  %230 = vmatpush.xpose.msra.mxu0 0.0
  %231 = vmatpush.xpose.msra.mxu0 0.0
  %232 = vmatpush.xpose.msra.mxu0 0.0
  %233 = vmatpush.xpose.msra.mxu0 0.0
  %234 = vmatpush.xpose.msra.mxu0 %v70
  %235 = vmatmul.f32.gmra.mxu0 %v51
  %v236 = vpop.f32.mrf.mxu0
  %v237 = vadd.f32 %v217, %v236
  %238 = vdwg.mxu0
  %v239 = vadd.f32 %v38, %v237
  %vm240 = vcmask 9216
  %241 = vst.msk [vmem:[%s1] sm:$0x3] %vm240, %v239
  // Predicated region
  $region10: #{bss_loss.1} parent=0 // pred_check
    _
  $region11: #{bss_loss.1} parent=0 // pred_check_branch
    %243 = sbr.rel (0) target = $region13
  $region12: #{bss_loss.1} parent=0 // pred_region
    _
  $region13: #{bss_loss.1} parent=0 // pred_fallthru
    _
  // Predicated region
  $region14: #{bss_loss.1} parent=0 // pred_check
    _
  $region15: #{bss_loss.1} parent=0 // pred_check_branch
    %245 = sbr.rel (0) target = $region17
  $region16: #{bss_loss.1} parent=0 // pred_region
    _
  $region17: #{bss_loss.1} parent=0 // pred_fallthru
    _

</llo_original>
